<compile_context>
chip_gen: v7x
topology: tpu7x:2x2x1
jax: 0.10.0
libtpu: 0.0.40
codegen_flags: <defaults>
</compile_context>

<pallas_src>
import functools

import jax
import jax.numpy as jnp
from jax.experimental import pallas as pl
from jax.experimental.pallas import tpu as pltpu


def _round_up(x, m):
    return ((x + m - 1) // m) * m


def _make_mlp_kernel(num_layers, compute_dtype):
    """Fused MLP kernel. Ref order: x, (w0, b0), ..., (w_last, b_last), out."""

    def kernel(*refs):
        x_ref = refs[0]
        o_ref = refs[-1]
        p = refs[1:-1]

        h = x_ref[...]  # (tile_b, F) in the input dtype; no unconditional cast
        # Hidden layers: Linear -> ReLU (-> Dropout == identity in eval mode).
        for i in range(num_layers - 1):
            w = p[2 * i][...]        # (d_in, d_out), compute_dtype
            b = p[2 * i + 1][...]    # (1, d_out), f32
            h = jnp.dot(h.astype(compute_dtype), w,
                        preferred_element_type=jnp.float32) + b
            h = jnp.maximum(h, 0.0)  # f32 elementwise (safe on v5e)

        # Final Linear(H -> 1): contract the feature axis of both operands so
        # the result is a lane-dense (1, tile_b) row (no masked (tile_b, 1)
        # stores, no N=1 MXU matmul).
        w_out = p[2 * (num_layers - 1)][...]      # (1, H), compute_dtype
        b_out = p[2 * (num_layers - 1) + 1][...]  # (1, 1), f32
        logits = jnp.einsum("oh,bh->ob", w_out, h.astype(compute_dtype),
                            preferred_element_type=jnp.float32) + b_out
        o_ref[...] = jax.nn.sigmoid(logits).astype(o_ref.dtype)  # EUP path

    return kernel


def init_bin_mlp_params(key, n_inputs, n_hidden):
    """Parameters matching the PyTorch module.

    Returns [w0, b0, ..., w_last, b_last]:
      hidden weights are (in, out) (PyTorch weight.T), biases (1, out);
      final weight is (1, hidden_last) (PyTorch layout), final bias (1, 1).
    """
    dims = [n_inputs] + list(n_hidden)
    params = []
    for i in range(len(n_hidden)):
        fan_in, fan_out = dims[i], dims[i + 1]
        key, kw, kb = jax.random.split(key, 3)
        bound = 1.0 / (fan_in ** 0.5)
        params.append(jax.random.uniform(kw, (fan_in, fan_out), jnp.float32, -bound, bound))
        params.append(jax.random.uniform(kb, (1, fan_out), jnp.float32, -bound, bound))
    fan_in = dims[-1]
    key, kw, kb = jax.random.split(key, 3)
    bound = 1.0 / (fan_in ** 0.5)
    params.append(jax.random.uniform(kw, (1, fan_in), jnp.float32, -bound, bound))
    params.append(jax.random.uniform(kb, (1, 1), jnp.float32, -bound, bound))
    return params


@functools.partial(jax.jit, static_argnames=("batch_tile", "compute_dtype"))
def bin_mlp_forward(x, params, batch_tile=512, compute_dtype=jnp.float32):
    """Fused binMLP forward. x: (B, F) -> (B, 1) sigmoid probabilities.

    batch_tile: rows per grid step (v6e/v5e ~512-1024; use ~256 on v7x's
    smaller 64 MiB VMEM). compute_dtype=jnp.bfloat16 feeds the MXU bf16.
    """
    B, F = x.shape
    num_layers = len(params) // 2

    # ---- batch tiling (pad B so the grid divides evenly) ----
    if B <= batch_tile:
        tile_b = _round_up(B, 8)             # single tile
    else:
        tile_b = _round_up(batch_tile, 128)  # multi-tile: lane-dense out blocks
    b_pad = _round_up(B, tile_b)
    num_tiles = b_pad // tile_b
    if b_pad != B:
        x = jnp.pad(x, ((0, b_pad - B), (0, 0)))  # padded rows sliced off below

    # ---- params: weights in compute dtype, biases kept f32 ----
    kparams = []
    for i in range(num_layers):
        kparams.append(params[2 * i].astype(compute_dtype))
        kparams.append(params[2 * i + 1].astype(jnp.float32))

    kernel = _make_mlp_kernel(num_layers, compute_dtype)

    in_specs = [pl.BlockSpec((tile_b, F), lambda i: (i, 0))]
    for p_arr in kparams:
        # Constant index_map -> DMA'd once, VMEM-resident for the whole grid.
        in_specs.append(pl.BlockSpec(p_arr.shape, lambda i: (0, 0)))
    out_specs = pl.BlockSpec((1, tile_b), lambda i: (0, i))  # lane-dense row

    # ---- cost estimate (helps XLA schedule around the custom call) ----
    flops = 0
    max_width = F
    for i in range(num_layers - 1):
        d_in, d_out = params[2 * i].shape
        flops += 2 * b_pad * d_in * d_out
        max_width = max(max_width, d_out)
    h_last = params[2 * (num_layers - 1)].shape[1]
    flops += 2 * b_pad * h_last
    param_bytes = sum(p.size * p.dtype.itemsize for p in kparams)
    bytes_accessed = b_pad * F * x.dtype.itemsize + param_bytes + b_pad * 4
    cost = pl.CostEstimate(flops=flops, transcendentals=b_pad,
                           bytes_accessed=bytes_accessed)

    # ---- explicit VMEM budget: double-buffered x/out tiles + resident params
    #      + headroom for f32 intermediates; capped so it is safe on v7x ----
    x_tile_bytes = tile_b * F * x.dtype.itemsize
    vmem_needed = (2 * x_tile_bytes + 2 * tile_b * 4 + param_bytes
                   + 4 * tile_b * max_width * 4)
    vmem_limit = int(min(32 * 2**20, max(4 * 2**20, 2 * vmem_needed)))

    out = pl.pallas_call(
        kernel,
        out_shape=jax.ShapeDtypeStruct((1, b_pad), jnp.float32),
        grid_spec=pltpu.PrefetchScalarGridSpec(
            num_scalar_prefetch=0,
            grid=(num_tiles,),
            in_specs=in_specs,
            out_specs=out_specs,
        ),
        compiler_params=pltpu.CompilerParams(
            dimension_semantics=("parallel",),   # megacore sharding on v7x
            vmem_limit_bytes=vmem_limit,
        ),
        cost_estimate=cost,
    )(x, *kparams)

    return out[0, :B].reshape(B, 1)


def bin_mlp_reference(x, params):
    """Pure-JAX reference (eval-mode dropout == identity)."""
    num_layers = len(params) // 2
    h = x
    for i in range(num_layers - 1):
        w, b = params[2 * i], params[2 * i + 1]
        h = jnp.maximum(h @ w + b, 0.0)
    w_out, b_out = params[-2], params[-1]
    return jax.nn.sigmoid(h @ w_out.T + b_out)


if __name__ == "__main__":
    # Small shapes consistent with the module: n_inputs=16, n_hidden=[32, 32].
    n_inputs = 16
    n_hidden = [32, 32]

    key = jax.random.PRNGKey(0)
    key, kx, kp = jax.random.split(key, 3)
    params = init_bin_mlp_params(kp, n_inputs, n_hidden)

    # (a) small single-tile case (batch=8)
    x_small = jax.random.normal(kx, (8, n_inputs), jnp.float32)
    out = jax.block_until_ready(bin_mlp_forward(x_small, params))
    ref = bin_mlp_reference(x_small, params)
    assert out.shape == (8, 1), out.shape
    assert jnp.allclose(out, ref, atol=1e-5, rtol=1e-5), (
        f"max abs diff {jnp.max(jnp.abs(out - ref))}")

    # (b) multi-tile, pipelined + parallel grid (batch not a tile multiple)
    key, kx2 = jax.random.split(key)
    x_big = jax.random.normal(kx2, (1000, n_inputs), jnp.float32)
    out2 = jax.block_until_ready(bin_mlp_forward(x_big, params, batch_tile=256))
    ref2 = bin_mlp_reference(x_big, params)
    assert out2.shape == (1000, 1), out2.shape
    assert jnp.allclose(out2, ref2, atol=1e-5, rtol=1e-5), (
        f"max abs diff {jnp.max(jnp.abs(out2 - ref2))}")

    # (c) bf16-fed MXU fast path (v6e/v7x); f32 accumulation, looser tolerance
    out3 = jax.block_until_ready(
        bin_mlp_forward(x_big, params, batch_tile=256,
                        compute_dtype=jnp.bfloat16))
    assert out3.shape == (1000, 1), out3.shape
    assert jnp.allclose(out3, ref2, atol=3e-2, rtol=3e-2), (
        f"max abs diff {jnp.max(jnp.abs(out3 - ref2))}")

    print("KERNEL_OK")
</pallas_src>

<mosaic_0001>
module attributes {stable_mosaic.version = 11 : i64} {
  func.func @kernel(%arg0: i32, %arg1: memref<8x16xf32, #tpu.memory_space<vmem>>, %arg2: memref<16x32xf32, #tpu.memory_space<vmem>>, %arg3: memref<1x32xf32, #tpu.memory_space<vmem>>, %arg4: memref<32x32xf32, #tpu.memory_space<vmem>>, %arg5: memref<1x32xf32, #tpu.memory_space<vmem>>, %arg6: memref<1x32xf32, #tpu.memory_space<vmem>>, %arg7: memref<1x1xf32, #tpu.memory_space<vmem>>, %arg8: memref<1x8xf32, #tpu.memory_space<vmem>>) attributes {dimension_semantics = [#tpu.dimension_semantics<parallel>], iteration_bounds = array<i64: 1>, scalar_prefetch = 0 : i64, scratch_operands = 0 : i64, tpu.core_type = #tpu.core_type<tc>, window_params = [{transform_indices = @transform_0, window_bounds = array<i64: 8, 16>}, {pipeline_mode = #tpu.pipeline_mode<synchronous>, transform_indices = @transform_1, window_bounds = array<i64: 16, 32>}, {pipeline_mode = #tpu.pipeline_mode<synchronous>, transform_indices = @transform_2, window_bounds = array<i64: 1, 32>}, {pipeline_mode = #tpu.pipeline_mode<synchronous>, transform_indices = @transform_3, window_bounds = array<i64: 32, 32>}, {pipeline_mode = #tpu.pipeline_mode<synchronous>, transform_indices = @transform_4, window_bounds = array<i64: 1, 32>}, {pipeline_mode = #tpu.pipeline_mode<synchronous>, transform_indices = @transform_5, window_bounds = array<i64: 1, 32>}, {pipeline_mode = #tpu.pipeline_mode<synchronous>, transform_indices = @transform_6, window_bounds = array<i64: 1, 1>}, {transform_indices = @transform_7, window_bounds = array<i64: 1, 8>}]} {
    %c0 = arith.constant 0 : index
    %c0_0 = arith.constant 0 : index
    %0 = vector.load %arg1[%c0, %c0_0] : memref<8x16xf32, #tpu.memory_space<vmem>>, vector<8x16xf32>
    %c0_1 = arith.constant 0 : index
    %c0_2 = arith.constant 0 : index
    %1 = vector.load %arg2[%c0_1, %c0_2] : memref<16x32xf32, #tpu.memory_space<vmem>>, vector<16x32xf32>
    %c0_3 = arith.constant 0 : index
    %c0_4 = arith.constant 0 : index
    %2 = vector.load %arg3[%c0_3, %c0_4] : memref<1x32xf32, #tpu.memory_space<vmem>>, vector<1x32xf32>
    %cst = arith.constant dense<0.000000e+00> : vector<8x32xf32>
    %3 = tpu.matmul %0, %1, %cst {dimension_numbers = #tpu.dot_dimension_numbers<[1], [0], [0], [1], [0, 0, 1, 1], [], []>} : vector<8x16xf32>, vector<16x32xf32>, vector<8x32xf32> -> vector<8x32xf32>
    %4 = vector.broadcast %2 : vector<1x32xf32> to vector<8x32xf32>
    %5 = arith.addf %3, %4 : vector<8x32xf32>
    %cst_5 = arith.constant 0.000000e+00 : f32
    %6 = vector.broadcast %cst_5 : f32 to vector<8x32xf32>
    %7 = arith.maximumf %5, %6 : vector<8x32xf32>
    %c0_6 = arith.constant 0 : index
    %c0_7 = arith.constant 0 : index
    %8 = vector.load %arg4[%c0_6, %c0_7] : memref<32x32xf32, #tpu.memory_space<vmem>>, vector<32x32xf32>
    %c0_8 = arith.constant 0 : index
    %c0_9 = arith.constant 0 : index
    %9 = vector.load %arg5[%c0_8, %c0_9] : memref<1x32xf32, #tpu.memory_space<vmem>>, vector<1x32xf32>
    %cst_10 = arith.constant dense<0.000000e+00> : vector<8x32xf32>
    %10 = tpu.matmul %7, %8, %cst_10 {dimension_numbers = #tpu.dot_dimension_numbers<[1], [0], [0], [1], [0, 0, 1, 1], [], []>} : vector<8x32xf32>, vector<32x32xf32>, vector<8x32xf32> -> vector<8x32xf32>
    %11 = vector.broadcast %9 : vector<1x32xf32> to vector<8x32xf32>
    %12 = arith.addf %10, %11 : vector<8x32xf32>
    %cst_11 = arith.constant 0.000000e+00 : f32
    %13 = vector.broadcast %cst_11 : f32 to vector<8x32xf32>
    %14 = arith.maximumf %12, %13 : vector<8x32xf32>
    %c0_12 = arith.constant 0 : index
    %c0_13 = arith.constant 0 : index
    %15 = vector.load %arg6[%c0_12, %c0_13] : memref<1x32xf32, #tpu.memory_space<vmem>>, vector<1x32xf32>
    %c0_14 = arith.constant 0 : index
    %c0_15 = arith.constant 0 : index
    %16 = vector.load %arg7[%c0_14, %c0_15] : memref<1x1xf32, #tpu.memory_space<vmem>>, vector<1x1xf32>
    "tpu.trace_start"() <{level = 10 : i32, message = "oh,bh->ob"}> : () -> ()
    %cst_16 = arith.constant dense<0.000000e+00> : vector<1x8xf32>
    %17 = tpu.matmul %15, %14, %cst_16 {dimension_numbers = #tpu.dot_dimension_numbers<[1], [1], [0], [0], [0, 0, 1, 0], [], []>} : vector<1x32xf32>, vector<8x32xf32>, vector<1x8xf32> -> vector<1x8xf32>
    "tpu.trace_stop"() : () -> ()
    %18 = vector.broadcast %16 : vector<1x1xf32> to vector<1x8xf32>
    %19 = arith.addf %17, %18 : vector<1x8xf32>
    %20 = arith.negf %19 : vector<1x8xf32>
    %21 = math.exp %20 : vector<1x8xf32>
    %cst_17 = arith.constant 1.000000e+00 : f32
    %22 = vector.broadcast %cst_17 : f32 to vector<1x8xf32>
    %23 = arith.addf %22, %21 : vector<1x8xf32>
    %24 = arith.divf %22, %23 : vector<1x8xf32>
    %c0_18 = arith.constant 0 : index
    %c0_19 = arith.constant 0 : index
    %25 = vector.load %arg8[%c0_18, %c0_19] : memref<1x8xf32, #tpu.memory_space<vmem>>, vector<1x8xf32>
    tpu.vector_store %arg8[%c0_18, %c0_19], %24 {strides = array<i32>} : memref<1x8xf32, #tpu.memory_space<vmem>>, vector<1x8xf32>,
    return
  }
  func.func @transform_0(%arg0: i32) -> (i32, i32) {
    %c0_i32 = arith.constant 0 : i32
    %c0_i32_0 = arith.constant 0 : i32
    return %arg0, %c0_i32 : i32, i32
  }
  func.func @transform_1(%arg0: i32) -> (i32, i32) {
    %c0_i32 = arith.constant 0 : i32
    %c0_i32_0 = arith.constant 0 : i32
    %c0_i32_1 = arith.constant 0 : i32
    return %c0_i32, %c0_i32_0 : i32, i32
  }
  func.func @transform_2(%arg0: i32) -> (i32, i32) {
    %c0_i32 = arith.constant 0 : i32
    %c0_i32_0 = arith.constant 0 : i32
    %c0_i32_1 = arith.constant 0 : i32
    return %c0_i32, %c0_i32_0 : i32, i32
  }
  func.func @transform_3(%arg0: i32) -> (i32, i32) {
    %c0_i32 = arith.constant 0 : i32
    %c0_i32_0 = arith.constant 0 : i32
    %c0_i32_1 = arith.constant 0 : i32
    return %c0_i32, %c0_i32_0 : i32, i32
  }
  func.func @transform_4(%arg0: i32) -> (i32, i32) {
    %c0_i32 = arith.constant 0 : i32
    %c0_i32_0 = arith.constant 0 : i32
    %c0_i32_1 = arith.constant 0 : i32
    return %c0_i32, %c0_i32_0 : i32, i32
  }
  func.func @transform_5(%arg0: i32) -> (i32, i32) {
    %c0_i32 = arith.constant 0 : i32
    %c0_i32_0 = arith.constant 0 : i32
    %c0_i32_1 = arith.constant 0 : i32
    return %c0_i32, %c0_i32_0 : i32, i32
  }
  func.func @transform_6(%arg0: i32) -> (i32, i32) {
    %c0_i32 = arith.constant 0 : i32
    %c0_i32_0 = arith.constant 0 : i32
    %c0_i32_1 = arith.constant 0 : i32
    return %c0_i32, %c0_i32_0 : i32, i32
  }
  func.func @transform_7(%arg0: i32) -> (i32, i32) {
    %c0_i32 = arith.constant 0 : i32
    %c0_i32_0 = arith.constant 0 : i32
    return %c0_i32, %arg0 : i32, i32
  }
}

</mosaic_0001>

<llo_original>
// kernel: bin_mlp_forward.1
$region0: #{bin_mlp_forward.1}
  #allocation0 [shape = 'u32[]', space=smem, size = 0x4, offset = 0x4, fixed_abs, tag = 'smem constant byte address 0x4 - core index']
  #allocation1 [shape = 'u32[144,128]{1,0:T(1,128)}', space=vmem, size = 0x12000, scoped, tag = 'internal scratch']
  #allocation2 [shape = 'f32[1,1]{1,0:T(1,128)S(1)}', space=vmem, size = 0x200, scoped, tag = 'scoped memory for bin_mlp_forward.1']
  %s0 = inlined_call_operand.hbm [shape: f32[8,16], index: 0, kind: input, shape index: {}]
  %s1 = inlined_call_operand.hbm [shape: f32[16,32], index: 1, kind: input, shape index: {}]
  %s2 = inlined_call_operand.vmem [shape: f32[1,32], index: 2, kind: input, shape index: {}]
  %s3 = inlined_call_operand.hbm [shape: f32[32,32], index: 3, kind: input, shape index: {}]
  %s4 = inlined_call_operand.vmem [shape: f32[1,32], index: 4, kind: input, shape index: {}]
  %s5 = inlined_call_operand.vmem [shape: f32[1,32], index: 5, kind: input, shape index: {}]
  %s6 = inlined_call_operand.<no memory space> [shape: f32[1,1], index: 6, kind: input, shape index: {}]
  %s7 = inlined_call_operand.hbm [shape: f32[1,8], index: 7, kind: output, shape index: {}]
  %s8 = sld [smem:[#allocation0]]
  $region50: #{bin_mlp_forward.1} parent=0
    _
  %s10 = ssub.s32 1, %s8
  %s11 = scalar_select 0, %s10, %s8
  %v12 = vstv %s6
  %13 = vst [vmem:[#allocation2] sm:$0x1] %v12
  $region1: #{bin_mlp_forward.1} parent=0
    #allocation3 [shape = 'u8[4096]{0}', space=vmem, size = 0x1000, scoped, tag = 'input window, operand 0, single buffered']
    #allocation4 [shape = 's32[1]{0}', space=sflag, size = 0x4, scoped, tag = 'scoped memory for bin_mlp_forward.1']
    #allocation5 [shape = 's32[1]{0}', space=sflag, size = 0x4, scoped, tag = 'scoped memory for bin_mlp_forward.1']
    #allocation6 [shape = 'u8[8192]{0}', space=vmem, size = 0x2000, scoped, tag = 'input window, operand 1, single buffered']
    #allocation7 [shape = 's32[1]{0}', space=sflag, size = 0x4, scoped, tag = 'scoped memory for bin_mlp_forward.1']
    #allocation8 [shape = 'u8[16384]{0}', space=vmem, size = 0x4000, scoped, tag = 'input window, operand 3, single buffered']
    #allocation9 [shape = 'u8[512]{0}', space=vmem, size = 0x400, scoped, tag = 'output window, operand 0, single buffered']
    %14 = vsyncpa [#allocation4], 0
    %15 = vsyncpa [#allocation7], 0
    %16 = vsyncpa [#allocation5], 0
    // Predicated region
    $region2: #{bin_mlp_forward.1} parent=1 // pred_check
      _
    $region3: #{bin_mlp_forward.1} parent=1 // pred_check_branch
      %18 = sbr.rel (0) target = $region5
    $region4: #{bin_mlp_forward.1} parent=1 // pred_region
      %s20 = ssub.s32 128, 128
      %21 = vsyncadd [#allocation4], %s20
      %s23 = sshll.u32 [#allocation3], 4
      %s24 = int_to_ptr.vmem [resolvable:$true] %s23
      %26 = dma.hbm_to_vmem [thread:$0]  %s0, 128, %s24, [#allocation4]
    $region5: #{bin_mlp_forward.1} parent=1 // pred_fallthru
      _
    // Predicated region
    $region6: #{bin_mlp_forward.1} parent=1 // pred_check
      _
    $region7: #{bin_mlp_forward.1} parent=1 // pred_check_branch
      %28 = sbr.rel (0) target = $region9
    $region8: #{bin_mlp_forward.1} parent=1 // pred_region
      %s30 = ssub.s32 256, 256
      %31 = vsyncadd [#allocation7], %s30
      %s32 = sshll.u32 [#allocation6], 4
      %s33 = int_to_ptr.vmem [resolvable:$true] %s32
      %38 = dma.hbm_to_vmem [thread:$0]  %s1, 256, %s33, [#allocation7], 128, 128, 8
    $region9: #{bin_mlp_forward.1} parent=1 // pred_fallthru
      _
    // Predicated region
    $region10: #{bin_mlp_forward.1} parent=1 // pred_check
      _
    $region11: #{bin_mlp_forward.1} parent=1 // pred_check_branch
      %40 = sbr.rel (0) target = $region13
    $region12: #{bin_mlp_forward.1} parent=1 // pred_region
      _
    $region13: #{bin_mlp_forward.1} parent=1 // pred_fallthru
      _
    // Predicated region
    $region14: #{bin_mlp_forward.1} parent=1 // pred_check
      _
    $region15: #{bin_mlp_forward.1} parent=1 // pred_check_branch
      %42 = sbr.rel (0) target = $region17
    $region16: #{bin_mlp_forward.1} parent=1 // pred_region
      %s44 = ssub.s32 512, 512
      %45 = vsyncadd [#allocation7], %s44
      %s46 = sshll.u32 [#allocation8], 4
      %s47 = int_to_ptr.vmem [resolvable:$true] %s46
      %52 = dma.hbm_to_vmem [thread:$0]  %s3, 512, %s47, [#allocation7], 128, 128, 8
    $region17: #{bin_mlp_forward.1} parent=1 // pred_fallthru
      _
    // Predicated region
    $region18: #{bin_mlp_forward.1} parent=1 // pred_check
      _
    $region19: #{bin_mlp_forward.1} parent=1 // pred_check_branch
      %54 = sbr.rel (0) target = $region21
    $region20: #{bin_mlp_forward.1} parent=1 // pred_region
      _
    $region21: #{bin_mlp_forward.1} parent=1 // pred_fallthru
      _
    // Predicated region
    $region22: #{bin_mlp_forward.1} parent=1 // pred_check
      _
    $region23: #{bin_mlp_forward.1} parent=1 // pred_check_branch
      %56 = sbr.rel (0) target = $region25
    $region24: #{bin_mlp_forward.1} parent=1 // pred_region
      _
    $region25: #{bin_mlp_forward.1} parent=1 // pred_fallthru
      _
    // Predicated region
    $region26: #{bin_mlp_forward.1} parent=1 // pred_check
      _
    $region27: #{bin_mlp_forward.1} parent=1 // pred_check_branch
      %58 = sbr.rel (0) target = $region29
    $region28: #{bin_mlp_forward.1} parent=1 // pred_region
      _
    $region29: #{bin_mlp_forward.1} parent=1 // pred_fallthru
      _
    // Predicated region
    $region30: #{bin_mlp_forward.1} parent=1 // pred_check
      _
    $region31: #{bin_mlp_forward.1} parent=1 // pred_check_branch
      %60 = sbr.rel (0) target = $region33
    $region32: #{bin_mlp_forward.1} parent=1 // pred_region
      %61 = dma.done [#allocation4], 128
    $region33: #{bin_mlp_forward.1} parent=1 // pred_fallthru
      _
    // Predicated region
    $region34: #{bin_mlp_forward.1} parent=1 // pred_check
      _
    $region35: #{bin_mlp_forward.1} parent=1 // pred_check_branch
      %63 = sbr.rel (0) target = $region37
    $region36: #{bin_mlp_forward.1} parent=1 // pred_region
      %64 = dma.done [#allocation7], 256
    $region37: #{bin_mlp_forward.1} parent=1 // pred_fallthru
      _
    // Predicated region
    $region38: #{bin_mlp_forward.1} parent=1 // pred_check
      _
    $region39: #{bin_mlp_forward.1} parent=1 // pred_check_branch
      %66 = sbr.rel (0) target = $region41
    $region40: #{bin_mlp_forward.1} parent=1 // pred_region
      %67 = dma.done [#allocation7], 512
    $region41: #{bin_mlp_forward.1} parent=1 // pred_fallthru
      _
    %v68 = vld [vmem:[#allocation3] sm:$0xff]
    %v69 = vld [vmem:[#allocation6] sm:$0xff]
    %v70 = vld [vmem:[#allocation6 + $0x8] sm:$0xff]
    %v71 = vld [vmem:[%s2] sm:$0x1]
    %v73 = vlaneseq
    %v74 = vshrl.u32 %v73, 7
    %v75 = vsub.s32 0, %v74
    %v76 = vrot.slane %v71, %v75
    %vm78 = vcmask 130048
    %v80 = vsel %vm78, %v68, 0
    %82 = vmatprep.subr.mxu0 0.0
    %83 = vmatpush1.msra.mxu0 %v69
    %84 = vmatprep.subr.mxu0 0.0
    %85 = vmatpush1.msra.mxu0 %v70
    %86 = vmatprep.subr.mxu0 0.0
    %87 = vmatpush1.msra.mxu0 0.0
    %88 = vmatprep.subr.mxu0 0.0
    %89 = vmatpush1.msra.mxu0 0.0
    %90 = vmatprep.subr.mxu0 0.0
    %91 = vmatpush1.msra.mxu0 0.0
    %92 = vmatprep.subr.mxu0 0.0
    %93 = vmatpush1.msra.mxu0 0.0
    %94 = vmatprep.subr.mxu0 0.0
    %95 = vmatpush1.msra.mxu0 0.0
    %96 = vmatprep.subr.mxu0 0.0
    %97 = vmatpush1.msra.mxu0 0.0
    %98 = vmatprep.subr.mxu0 0.0
    %99 = vmatpush1.msra.mxu0 0.0
    %100 = vmatprep.subr.mxu0 0.0
    %101 = vmatpush1.msra.mxu0 0.0
    %102 = vmatprep.subr.mxu0 0.0
    %103 = vmatpush1.msra.mxu0 0.0
    %104 = vmatprep.subr.mxu0 0.0
    %105 = vmatpush1.msra.mxu0 0.0
    %106 = vmatprep.subr.mxu0 0.0
    %107 = vmatpush1.msra.mxu0 0.0
    %108 = vmatprep.subr.mxu0 0.0
    %109 = vmatpush1.msra.mxu0 0.0
    %110 = vmatprep.subr.mxu0 0.0
    %111 = vmatpush1.msra.mxu0 0.0
    %112 = vmatprep.subr.mxu0 0.0
    %113 = vmatpush1.msra.mxu0 0.0
    %114 = vmatprep.subr.mxu0 0.0
    %115 = vmatpush1.msra.mxu0 0.0
    %116 = vmatprep.subr.mxu0 0.0
    %117 = vmatpush1.msra.mxu0 0.0
    %118 = vmatprep.subr.mxu0 0.0
    %119 = vmatpush1.msra.mxu0 0.0
    %120 = vmatprep.subr.mxu0 0.0
    %121 = vmatpush1.msra.mxu0 0.0
    %122 = vmatprep.subr.mxu0 0.0
    %123 = vmatpush1.msra.mxu0 0.0
    %124 = vmatprep.subr.mxu0 0.0
    %125 = vmatpush1.msra.mxu0 0.0
    %126 = vmatprep.subr.mxu0 0.0
    %127 = vmatpush1.msra.mxu0 0.0
    %128 = vmatprep.subr.mxu0 0.0
    %129 = vmatpush1.msra.mxu0 0.0
    %130 = vmatprep.subr.mxu0 0.0
    %131 = vmatpush1.msra.mxu0 0.0
    %132 = vmatprep.subr.mxu0 0.0
    %133 = vmatpush1.msra.mxu0 0.0
    %134 = vmatprep.subr.mxu0 0.0
    %135 = vmatpush1.msra.mxu0 0.0
    %136 = vmatprep.subr.mxu0 0.0
    %137 = vmatpush1.msra.mxu0 0.0
    %138 = vmatprep.subr.mxu0 0.0
    %139 = vmatpush1.msra.mxu0 0.0
    %140 = vmatprep.subr.mxu0 0.0
    %141 = vmatpush1.msra.mxu0 0.0
    %142 = vmatprep.subr.mxu0 0.0
    %143 = vmatpush1.msra.mxu0 0.0
    %144 = vmatprep.subr.mxu0 0.0
    %145 = vmatpush1.msra.mxu0 0.0
    %146 = vmatprep.mubr.f32.mxu0 0.0
    %147 = vmatmul.mubr.f32.gmra.mrb[0].mxu0 %v80
    %v148 = vpop.f32.mrb[0].mxu0
    %v149 = vadd.f32 %v76, %v148
    %v150 = vpop.f32.mrb[0].mxu0
    %151 = vdwg.mxu0
    %v152 = vmax.f32 %v149, 0.0
    %v153 = vld [vmem:[#allocation8] sm:$0xff]
    %v154 = vld [vmem:[#allocation8 + $0x8] sm:$0xff]
    %v155 = vld [vmem:[#allocation8 + $0x10] sm:$0xff]
    %v156 = vld [vmem:[#allocation8 + $0x18] sm:$0xff]
    %v157 = vld [vmem:[%s4] sm:$0x1]
    %v159 = vlaneseq
    %v160 = vshrl.u32 %v159, 7
    %v161 = vsub.s32 0, %v160
    %v162 = vrot.slane %v157, %v161
    %vm164 = vcmask 261120
    %v166 = vsel %vm164, %v152, 0
    %168 = vmatprep.subr.mxu0 0.0
    %169 = vmatpush1.msra.mxu0 %v153
    %170 = vmatprep.subr.mxu0 0.0
    %171 = vmatpush1.msra.mxu0 %v154
    %172 = vmatprep.subr.mxu0 0.0
    %173 = vmatpush1.msra.mxu0 %v155
    %174 = vmatprep.subr.mxu0 0.0
    %175 = vmatpush1.msra.mxu0 %v156
    %176 = vmatprep.subr.mxu0 0.0
    %177 = vmatpush1.msra.mxu0 0.0
    %178 = vmatprep.subr.mxu0 0.0
    %179 = vmatpush1.msra.mxu0 0.0
    %180 = vmatprep.subr.mxu0 0.0
    %181 = vmatpush1.msra.mxu0 0.0
    %182 = vmatprep.subr.mxu0 0.0
    %183 = vmatpush1.msra.mxu0 0.0
    %184 = vmatprep.subr.mxu0 0.0
    %185 = vmatpush1.msra.mxu0 0.0
    %186 = vmatprep.subr.mxu0 0.0
    %187 = vmatpush1.msra.mxu0 0.0
    %188 = vmatprep.subr.mxu0 0.0
    %189 = vmatpush1.msra.mxu0 0.0
    %190 = vmatprep.subr.mxu0 0.0
    %191 = vmatpush1.msra.mxu0 0.0
    %192 = vmatprep.subr.mxu0 0.0
    %193 = vmatpush1.msra.mxu0 0.0
    %194 = vmatprep.subr.mxu0 0.0
    %195 = vmatpush1.msra.mxu0 0.0
    %196 = vmatprep.subr.mxu0 0.0
    %197 = vmatpush1.msra.mxu0 0.0
    %198 = vmatprep.subr.mxu0 0.0
    %199 = vmatpush1.msra.mxu0 0.0
    %200 = vmatprep.subr.mxu0 0.0
    %201 = vmatpush1.msra.mxu0 0.0
    %202 = vmatprep.subr.mxu0 0.0
    %203 = vmatpush1.msra.mxu0 0.0
    %204 = vmatprep.subr.mxu0 0.0
    %205 = vmatpush1.msra.mxu0 0.0
    %206 = vmatprep.subr.mxu0 0.0
    %207 = vmatpush1.msra.mxu0 0.0
    %208 = vmatprep.subr.mxu0 0.0
    %209 = vmatpush1.msra.mxu0 0.0
    %210 = vmatprep.subr.mxu0 0.0
    %211 = vmatpush1.msra.mxu0 0.0
    %212 = vmatprep.subr.mxu0 0.0
    %213 = vmatpush1.msra.mxu0 0.0
    %214 = vmatprep.subr.mxu0 0.0
    %215 = vmatpush1.msra.mxu0 0.0
    %216 = vmatprep.subr.mxu0 0.0
    %217 = vmatpush1.msra.mxu0 0.0
    %218 = vmatprep.subr.mxu0 0.0
    %219 = vmatpush1.msra.mxu0 0.0
    %220 = vmatprep.subr.mxu0 0.0
    %221 = vmatpush1.msra.mxu0 0.0
    %222 = vmatprep.subr.mxu0 0.0
    %223 = vmatpush1.msra.mxu0 0.0
    %224 = vmatprep.subr.mxu0 0.0
    %225 = vmatpush1.msra.mxu0 0.0
    %226 = vmatprep.subr.mxu0 0.0
    %227 = vmatpush1.msra.mxu0 0.0
    %228 = vmatprep.subr.mxu0 0.0
    %229 = vmatpush1.msra.mxu0 0.0
    %230 = vmatprep.subr.mxu0 0.0
    %231 = vmatpush1.msra.mxu0 0.0
    %232 = vmatprep.mubr.f32.mxu0 0.0
    %233 = vmatmul.mubr.f32.gmra.mrb[0].mxu0 %v166
    %v234 = vpop.f32.mrb[0].mxu0
    %v235 = vadd.f32 %v162, %v234
    %v236 = vpop.f32.mrb[0].mxu0
    %237 = vdwg.mxu0
    %v238 = vmax.f32 %v235, 0.0
    %v239 = vld [vmem:[%s5] sm:$0x1]
    %v240 = vld [vmem:[#allocation2] sm:$0x1]
    %242 = vset.pattern.permute.xlu0 0
    %243 = vperm.xlu0 %242, %v240
    %v244 = vpop.permute.xlu0 %243
    %v246 = vlaneseq
    %v247 = vshrl.u32 %v246, 7
    %v248 = vsub.s32 0, %v247
    %v249 = vrot.slane %v244, %v248
    %v251 = vsel %vm164, %v239, 0
    %v254 = vsel %vm164, %v238, 0
    %256 = vmatprep.subr.mxu0 0.0
    %257 = vmatpush1.xpose.msra.mxu0 %v254
    %258 = vmatprep.subr.mxu0 0.0
    %259 = vmatpush1.xpose.msra.mxu0 0.0
    %260 = vmatprep.subr.mxu0 0.0
    %261 = vmatpush1.xpose.msra.mxu0 0.0
    %262 = vmatprep.subr.mxu0 0.0
    %263 = vmatpush1.xpose.msra.mxu0 0.0
    %264 = vmatprep.subr.mxu0 0.0
    %265 = vmatpush1.xpose.msra.mxu0 0.0
    %266 = vmatprep.subr.mxu0 0.0
    %267 = vmatpush1.xpose.msra.mxu0 0.0
    %268 = vmatprep.subr.mxu0 0.0
    %269 = vmatpush1.xpose.msra.mxu0 0.0
    %270 = vmatprep.subr.mxu0 0.0
    %271 = vmatpush1.xpose.msra.mxu0 0.0
    %272 = vmatprep.subr.mxu0 0.0
    %273 = vmatpush1.xpose.msra.mxu0 0.0
    %274 = vmatprep.subr.mxu0 0.0
    %275 = vmatpush1.xpose.msra.mxu0 0.0
    %276 = vmatprep.subr.mxu0 0.0
    %277 = vmatpush1.xpose.msra.mxu0 0.0
    %278 = vmatprep.subr.mxu0 0.0
    %279 = vmatpush1.xpose.msra.mxu0 0.0
    %280 = vmatprep.subr.mxu0 0.0
    %281 = vmatpush1.xpose.msra.mxu0 0.0
    %282 = vmatprep.subr.mxu0 0.0
    %283 = vmatpush1.xpose.msra.mxu0 0.0
    %284 = vmatprep.subr.mxu0 0.0
    %285 = vmatpush1.xpose.msra.mxu0 0.0
    %286 = vmatprep.subr.mxu0 0.0
    %287 = vmatpush1.xpose.msra.mxu0 0.0
    %288 = vmatprep.subr.mxu0 0.0
    %289 = vmatpush1.xpose.msra.mxu0 0.0
    %290 = vmatprep.subr.mxu0 0.0
    %291 = vmatpush1.xpose.msra.mxu0 0.0
    %292 = vmatprep.subr.mxu0 0.0
    %293 = vmatpush1.xpose.msra.mxu0 0.0
    %294 = vmatprep.subr.mxu0 0.0
    %295 = vmatpush1.xpose.msra.mxu0 0.0
    %296 = vmatprep.subr.mxu0 0.0
    %297 = vmatpush1.xpose.msra.mxu0 0.0
    %298 = vmatprep.subr.mxu0 0.0
    %299 = vmatpush1.xpose.msra.mxu0 0.0
    %300 = vmatprep.subr.mxu0 0.0
    %301 = vmatpush1.xpose.msra.mxu0 0.0
    %302 = vmatprep.subr.mxu0 0.0
    %303 = vmatpush1.xpose.msra.mxu0 0.0
    %304 = vmatprep.subr.mxu0 0.0
    %305 = vmatpush1.xpose.msra.mxu0 0.0
    %306 = vmatprep.subr.mxu0 0.0
    %307 = vmatpush1.xpose.msra.mxu0 0.0
    %308 = vmatprep.subr.mxu0 0.0
    %309 = vmatpush1.xpose.msra.mxu0 0.0
    %310 = vmatprep.subr.mxu0 0.0
    %311 = vmatpush1.xpose.msra.mxu0 0.0
    %312 = vmatprep.subr.mxu0 0.0
    %313 = vmatpush1.xpose.msra.mxu0 0.0
    %314 = vmatprep.subr.mxu0 0.0
    %315 = vmatpush1.xpose.msra.mxu0 0.0
    %316 = vmatprep.subr.mxu0 0.0
    %317 = vmatpush1.xpose.msra.mxu0 0.0
    %318 = vmatprep.subr.mxu0 0.0
    %319 = vmatpush1.xpose.msra.mxu0 0.0
    %320 = vmatprep.mubr.f32.mxu0 0.0
    %321 = vmatmul.mubr.f32.gmra.mrb[0].mxu0 %v251
    %v322 = vpop.f32.mrb[0].mxu0
    %v323 = vadd.f32 %v249, %v322
    %v324 = vpop.f32.mrb[0].mxu0
    %325 = vdwg.mxu0
    %v326 = vxor.u32 %v323, 2147483648
    %v327 = vmul.f32 %v326, 1.442695
    %v328 = vpow.pop %v327
    %v329 = vadd.f32 %v328, 1.0
    %v330 = vrcp.pop %v329
    %v331 = vmul.f32 1.0, %v330
    %vm332 = vcmask 57344
    %333 = vst.msk [vmem:[#allocation9] sm:$0x1] %vm332, %v331
    // Predicated region
    $region42: #{bin_mlp_forward.1} parent=1 // pred_check
      _
    $region43: #{bin_mlp_forward.1} parent=1 // pred_check_branch
      %335 = sbr.rel (0) target = $region45
    $region44: #{bin_mlp_forward.1} parent=1 // pred_region
      %s337 = ssub.s32 16, 16
      %338 = vsyncadd [#allocation5], %s337
      %s340 = sshll.u32 [#allocation9], 4
      %s341 = int_to_ptr.vmem [resolvable:$true] %s340
      %343 = dma.vmem_to_hbm [thread:$0]  %s341, 16, %s7, [#allocation5]
    $region45: #{bin_mlp_forward.1} parent=1 // pred_fallthru
      _
    // Predicated region
    $region46: #{bin_mlp_forward.1} parent=1 // pred_check
      _
    $region47: #{bin_mlp_forward.1} parent=1 // pred_check_branch
      %345 = sbr.rel (0) target = $region49
    $region48: #{bin_mlp_forward.1} parent=1 // pred_region
      %346 = dma.done [#allocation5], 16
    $region49: #{bin_mlp_forward.1} parent=1 // pred_fallthru
      _
    %347 = vsyncpa [#allocation4], 1
    %348 = vsyncpa [#allocation7], 1
    %349 = vsyncpa [#allocation5], 1

</llo_original>
